<compile_context>
chip_gen: v5e
topology: v5e:2x2
jax: 0.10.0
libtpu: 0.0.40
codegen_flags: <defaults>
</compile_context>

<pallas_src>
import functools

import jax
import jax.numpy as jnp
from jax.experimental import pallas as pl
from jax.experimental.pallas import tpu as pltpu


def _gmm_sample_kernel(logits_ref, mean_ref, colsum_ref, ue_ref, z_ref, stats_ref,
                       *, true_batch: int):
    # logits_ref : (1, K)      log-softmaxed mixture logits (resident)
    # mean_ref   : (K, D)      component means (resident)
    # colsum_ref : (K, D)      column-summed sqrt-precision matrices (resident)
    # ue_ref     : (TB, D+K)   fused [eps | u01] stream for this batch tile
    # z_ref      : (TB, D)     per-tile output block (pipelined writeback)
    # stats_ref  : (8, SL)     per-tile BN partials: row0[:D]=sum(z), row0[D:2D]=sum(z^2)
    t = pl.program_id(0)
    TB = ue_ref.shape[0]
    K = logits_ref.shape[1]
    D = mean_ref.shape[1]

    eps = ue_ref[:, 0:D]                                             # (TB, D)

    # Gumbel-max categorical sampling: g = logits - log(-log(u)).
    # Clamp keeps u strictly inside (0, 1); a no-op for draws in [1e-7, 1) and makes the
    # zero-padded tail rows finite.
    u = jnp.clip(ue_ref[:, D:D + K], 1.1754944e-38, 1.0 - 2.0 ** -24)
    g = logits_ref[...] - jnp.log(-jnp.log(u))                       # (TB, K)

    gmax = jnp.max(g, axis=1, keepdims=True)
    iota_k = jax.lax.broadcasted_iota(jnp.int32, (TB, K), 1)
    # first index attaining the max (matches torch.argmax tie-breaking)
    memb = jnp.min(jnp.where(g >= gmax, iota_k, K), axis=1, keepdims=True)  # (TB, 1)

    # Component gather as a select chain (1 VPU op per component instead of mul+add);
    # K is tiny, so this stays off the MXU entirely.
    mean_g = jnp.broadcast_to(mean_ref[0:1, :], (TB, D))
    scale_g = jnp.broadcast_to(colsum_ref[0:1, :], (TB, D))
    for k in range(1, K):
        sel = memb == k                                              # (TB, 1)
        mean_g = jnp.where(sel, mean_ref[k:k + 1, :], mean_g)
        scale_g = jnp.where(sel, colsum_ref[k:k + 1, :], scale_g)

    # (eps[:,None,:] * sqrtprec[m]).sum(dim=1)  ==  eps * column_sum(sqrtprec[m])
    z_t = mean_g + eps * scale_g                                     # (TB, D)
    z_ref[...] = z_t

    # Per-tile BatchNorm partial sums over *valid* rows only (padded rows masked); the
    # tiny mu/rstd finalize happens in the wrapper, normalization in the second pass.
    row = jax.lax.broadcasted_iota(jnp.int32, (TB, 1), 0) + t * TB
    valid = (row < true_batch).astype(jnp.float32)                   # (TB, 1)
    zm = z_t * valid
    stats_ref[...] = jnp.zeros_like(stats_ref)
    stats_ref[0:1, 0:D] = jnp.sum(zm, axis=0, keepdims=True)
    stats_ref[0:1, D:2 * D] = jnp.sum(zm * z_t, axis=0, keepdims=True)


def _normalize_kernel(z_ref, ss_ref, o_ref):
    # BatchNorm1d apply (training-mode batch stats, affine=False):
    #   o = z * rstd + (-mu * rstd)     with ss_ref row 0 = rstd, row 1 = -mu*rstd.
    # Operates on the lane-dense packed view, so loads/stores are full-lane.
    o_ref[...] = z_ref[...] * ss_ref[0:1, :] + ss_ref[1:2, :]


def _pick_batch_tile(batch: int) -> int:
    # Sublane-aligned batch tiles; large tiles amortize the ~0.35 us per-grid-step cost
    # (streamed bytes per step are tiny), while staying far below VMEM limits on v7x.
    b8 = -(-batch // 8) * 8
    if b8 <= 4096:
        return b8                                   # whole batch in one grid step
    for tb in (4096, 2048, 1024, 512, 256, 128, 64, 32):
        if ((-b8) % tb) * 8 <= b8:                  # keep padding overhead <= 12.5%
            return tb
    return 32


def _as_f32(x):
    return x if x.dtype == jnp.float32 else x.astype(jnp.float32)


@jax.jit
def gaussian_mixture_sample(logits_unnormalized, comp_mean, comp_sqrtprec, u01, eps):
    B, D = eps.shape
    K = comp_mean.shape[0]

    # ---- per-call-constant preprocessing hoisted out of the kernels -----------------
    #  * log-softmax of the K mixture logits (K-element scalar work)
    #  * column sum of the (K, D, D) sqrt-precision tensor -> (K, D); the kernel only
    #    ever uses this sum, so shipping the full tensor would be D x more DMA/VMEM.
    logits = _as_f32(logits_unnormalized).reshape(1, K)
    logits = logits - jax.scipy.special.logsumexp(logits, axis=-1, keepdims=True)
    colsum = jnp.sum(_as_f32(comp_sqrtprec), axis=1)                 # (K, D)
    mean = _as_f32(comp_mean)

    # One fused random stream per row: [eps | u01] -> (B, D+K); one DMA stream per grid
    # step and one lane-padded VMEM buffer instead of two.
    fused = jnp.concatenate([_as_f32(eps), _as_f32(u01)], axis=1)

    # ---- batch tiling / padding ------------------------------------------------------
    TB = _pick_batch_tile(B)
    Bpad = -(-B // TB) * TB
    NB = Bpad // TB
    if Bpad != B:
        fused = jnp.pad(fused, ((0, Bpad - B), (0, 0)))

    SL = max(128, -(-2 * D // 128) * 128)           # lane extent of the stats rows

    # Per-step VMEM footprint (TB=4096, D=32): ~2 MiB fused-in + ~2 MiB z-out, x2 double
    # buffers ~= 8-9 MiB -> fits the default scoped VMEM on v5e/v6e/v7x; no explicit
    # vmem_limit_bytes needed now that nothing scales with B.
    sample = functools.partial(_gmm_sample_kernel, true_batch=B)
    z_raw, stats = pl.pallas_call(
        sample,
        out_shape=(
            jax.ShapeDtypeStruct((Bpad, D), jnp.float32),
            jax.ShapeDtypeStruct((8 * NB, SL), jnp.float32),
        ),
        grid=(NB,),
        in_specs=[
            pl.BlockSpec((1, K), lambda t: (0, 0)),        # normalized logits (resident)
            pl.BlockSpec((K, D), lambda t: (0, 0)),        # component means (resident)
            pl.BlockSpec((K, D), lambda t: (0, 0)),        # sqrt-precision column sums
            pl.BlockSpec((TB, D + K), lambda t: (t, 0)),   # fused [eps | u01] stream
        ],
        out_specs=(
            pl.BlockSpec((TB, D), lambda t: (t, 0)),       # per-tile z writeback
            pl.BlockSpec((8, SL), lambda t: (t, 0)),       # per-tile BN partial sums
        ),
        compiler_params=pltpu.CompilerParams(
            # No cross-tile dependence left -> parallel axis (both v7x TensorCores work).
            dimension_semantics=("parallel",),
        ),
    )(logits, mean, colsum, fused)

    # ---- finalize BatchNorm statistics (tiny, O(NB*D), true B in the denominator) ----
    ssum = jnp.sum(stats[:, 0:D], axis=0)
    sqsum = jnp.sum(stats[:, D:2 * D], axis=0)
    mu = ssum / B
    var = jnp.maximum(sqsum / B - mu * mu, 0.0)     # biased variance (training-mode BN)
    rstd = jax.lax.rsqrt(var + 1e-5)
    scale = rstd
    shift = -mu * rstd

    # ---- pass 2: lane-dense in-place normalization ------------------------------------
    # View z as (Bpad/P, P*D) with P*D = 128 lanes (free contiguous reshape in HBM) so
    # every load/store in this pass is an unmasked full-lane access.
    P = 128 // D if (D < 128 and 128 % D == 0) else 1
    if TB % P != 0 or Bpad % P != 0:
        P = 1
    TB2 = TB // P
    zp = z_raw.reshape(Bpad // P, P * D)
    ss = jnp.concatenate([jnp.tile(scale, P)[None, :],
                          jnp.tile(shift, P)[None, :]], axis=0)      # (2, P*D)

    z_norm = pl.pallas_call(
        _normalize_kernel,
        out_shape=jax.ShapeDtypeStruct((Bpad // P, P * D), jnp.float32),
        grid=(NB,),
        in_specs=[
            pl.BlockSpec((TB2, P * D), lambda t: (t, 0)),  # packed z tiles (streamed)
            pl.BlockSpec((2, P * D), lambda t: (0, 0)),    # rstd / -mu*rstd (resident)
        ],
        out_specs=pl.BlockSpec((TB2, P * D), lambda t: (t, 0)),
        input_output_aliases={0: 0},                        # normalize z in place
        compiler_params=pltpu.CompilerParams(
            dimension_semantics=("parallel",),
        ),
    )(zp, ss)

    z = z_norm.reshape(Bpad, D)
    return z[:B] if Bpad != B else z


def _reference(logits_unnorm, comp_mean, comp_sqrtprec, u01, eps):
    logits = logits_unnorm - jax.scipy.special.logsumexp(logits_unnorm)
    g = logits[None, :] - jnp.log(-jnp.log(u01))
    memb = jnp.argmax(g, axis=1)
    z = comp_mean[memb] + (eps[:, None, :] * comp_sqrtprec[memb]).sum(axis=1)
    mu = z.mean(axis=0)
    var = ((z - mu) ** 2).mean(axis=0)
    return (z - mu) / jnp.sqrt(var + 1e-5)


if __name__ == "__main__":
    # Small shapes consistent with the module: batch=8, z_dim=32, num_components=4.
    B, D, K = 8, 32, 4

    key = jax.random.PRNGKey(0)
    k_mean, k_noise, k_logits, k_u, k_eps = jax.random.split(key, 5)

    # Deterministic parameter init mirroring __init__:
    component_mean = jax.random.normal(k_mean, (K, D), dtype=jnp.float32)
    eyes = jnp.tile(jnp.eye(D, dtype=jnp.float32)[None, :, :], (K, 1, 1))
    component_sqrtprecision = eyes + 0.01 * jax.random.normal(
        k_noise, (K, D, D), dtype=jnp.float32)
    logits_unnormalized = jax.random.normal(k_logits, (K,), dtype=jnp.float32)

    # Randomness consumed by forward (Gumbel uniforms + gaussian eps):
    u01 = jax.random.uniform(k_u, (B, K), dtype=jnp.float32, minval=1e-7, maxval=1.0)
    eps = jax.random.normal(k_eps, (B, D), dtype=jnp.float32)

    z = gaussian_mixture_sample(logits_unnormalized, component_mean,
                                component_sqrtprecision, u01, eps)
    z = jax.block_until_ready(z)

    z_ref = _reference(logits_unnormalized, component_mean,
                       component_sqrtprecision, u01, eps)
    assert z.shape == (B, D)
    assert jnp.allclose(z, z_ref, atol=1e-4, rtol=1e-4), "mismatch vs JAX reference"

    print("KERNEL_OK")
</pallas_src>

<mosaic_0001>
module attributes {stable_mosaic.version = 11 : i64} {
  func.func @_gmm_sample_kernel(%arg0: i32, %arg1: memref<1x4xf32, #tpu.memory_space<vmem>>, %arg2: memref<4x32xf32, #tpu.memory_space<vmem>>, %arg3: memref<4x32xf32, #tpu.memory_space<vmem>>, %arg4: memref<8x36xf32, #tpu.memory_space<vmem>>, %arg5: memref<8x32xf32, #tpu.memory_space<vmem>>, %arg6: memref<8x128xf32, #tpu.memory_space<vmem>>) attributes {dimension_semantics = [#tpu.dimension_semantics<parallel>], iteration_bounds = array<i64: 1>, scalar_prefetch = 0 : i64, scratch_operands = 0 : i64, tpu.core_type = #tpu.core_type<tc>, window_params = [{pipeline_mode = #tpu.pipeline_mode<synchronous>, transform_indices = @transform_0, window_bounds = array<i64: 1, 4>}, {pipeline_mode = #tpu.pipeline_mode<synchronous>, transform_indices = @transform_1, window_bounds = array<i64: 4, 32>}, {pipeline_mode = #tpu.pipeline_mode<synchronous>, transform_indices = @transform_2, window_bounds = array<i64: 4, 32>}, {transform_indices = @transform_3, window_bounds = array<i64: 8, 36>}, {transform_indices = @transform_4, window_bounds = array<i64: 8, 32>}, {transform_indices = @transform_5, window_bounds = array<i64: 8, 128>}]} {
    %c0 = arith.constant 0 : index
    %c0_0 = arith.constant 0 : index
    %0 = vector.load %arg4[%c0, %c0_0] : memref<8x36xf32, #tpu.memory_space<vmem>>, vector<8x32xf32>
    %c0_1 = arith.constant 0 : index
    %c32 = arith.constant 32 : index
    %1 = vector.load %arg4[%c0_1, %c32] : memref<8x36xf32, #tpu.memory_space<vmem>>, vector<8x4xf32>
    %cst = arith.constant 1.17549435E-38 : f32
    %cst_2 = arith.constant 0.99999994 : f32
    %2 = vector.broadcast %cst : f32 to vector<8x4xf32>
    %3 = arith.maximumf %2, %1 : vector<8x4xf32>
    %4 = vector.broadcast %cst_2 : f32 to vector<8x4xf32>
    %5 = arith.minimumf %4, %3 : vector<8x4xf32>
    %c0_3 = arith.constant 0 : index
    %c0_4 = arith.constant 0 : index
    %6 = vector.load %arg1[%c0_3, %c0_4] : memref<1x4xf32, #tpu.memory_space<vmem>>, vector<1x4xf32>
    %7 = math.log %5 : vector<8x4xf32>
    %cst_5 = arith.constant 0.000000e+00 : f32
    %8 = vector.broadcast %cst_5 : f32 to vector<8x4xf32>
    %9 = arith.subf %8, %7 : vector<8x4xf32>
    %10 = math.log %9 : vector<8x4xf32>
    %11 = vector.broadcast %6 : vector<1x4xf32> to vector<8x4xf32>
    %12 = arith.subf %11, %10 : vector<8x4xf32>
    %cst_6 = arith.constant dense<0xFF800000> : vector<8xf32>
    %13 = vector.multi_reduction <maximumf>, %12, %cst_6 [1] : vector<8x4xf32> to vector<8xf32>
    %14 = vector.shape_cast %13 : vector<8xf32> to vector<8x1xf32>
    %15 = tpu.iota {dimensions = array<i32: 1>} : vector<8x4xi32>
    %16 = vector.broadcast %14 : vector<8x1xf32> to vector<8x4xf32>
    %17 = arith.cmpf oge, %12, %16 : vector<8x4xf32>
    %c4_i32 = arith.constant 4 : i32
    %18 = vector.broadcast %c4_i32 : i32 to vector<8x4xi32>
    %19 = arith.select %17, %15, %18 : vector<8x4xi1>, vector<8x4xi32>
    %cst_7 = arith.constant dense<2147483647> : vector<8xi32>
    %20 = vector.multi_reduction <minsi>, %19, %cst_7 [1] : vector<8x4xi32> to vector<8xi32>
    %21 = vector.shape_cast %20 : vector<8xi32> to vector<8x1xi32>
    %c0_8 = arith.constant 0 : index
    %c0_9 = arith.constant 0 : index
    %22 = vector.load %arg2[%c0_8, %c0_9] : memref<4x32xf32, #tpu.memory_space<vmem>>, vector<1x32xf32>
    %23 = vector.shape_cast %22 : vector<1x32xf32> to vector<1x32xf32>
    %24 = vector.broadcast %23 : vector<1x32xf32> to vector<8x32xf32>
    %c0_10 = arith.constant 0 : index
    %c0_11 = arith.constant 0 : index
    %25 = vector.load %arg3[%c0_10, %c0_11] : memref<4x32xf32, #tpu.memory_space<vmem>>, vector<1x32xf32>
    %26 = vector.shape_cast %25 : vector<1x32xf32> to vector<1x32xf32>
    %27 = vector.broadcast %26 : vector<1x32xf32> to vector<8x32xf32>
    %c1_i32 = arith.constant 1 : i32
    %28 = vector.broadcast %c1_i32 : i32 to vector<8x1xi32>
    %29 = arith.cmpi eq, %21, %28 : vector<8x1xi32>
    %c1 = arith.constant 1 : index
    %c0_12 = arith.constant 0 : index
    %30 = vector.load %arg2[%c1, %c0_12] : memref<4x32xf32, #tpu.memory_space<vmem>>, vector<1x32xf32>
    %31 = vector.shape_cast %29 : vector<8x1xi1> to vector<8x1xi1>
    %32 = vector.broadcast %31 : vector<8x1xi1> to vector<8x32xi1>
    %33 = vector.shape_cast %30 : vector<1x32xf32> to vector<1x32xf32>
    %34 = vector.broadcast %33 : vector<1x32xf32> to vector<8x32xf32>
    %35 = arith.select %32, %34, %24 : vector<8x32xi1>, vector<8x32xf32>
    %c1_13 = arith.constant 1 : index
    %c0_14 = arith.constant 0 : index
    %36 = vector.load %arg3[%c1_13, %c0_14] : memref<4x32xf32, #tpu.memory_space<vmem>>, vector<1x32xf32>
    %37 = vector.shape_cast %29 : vector<8x1xi1> to vector<8x1xi1>
    %38 = vector.broadcast %37 : vector<8x1xi1> to vector<8x32xi1>
    %39 = vector.shape_cast %36 : vector<1x32xf32> to vector<1x32xf32>
    %40 = vector.broadcast %39 : vector<1x32xf32> to vector<8x32xf32>
    %41 = arith.select %38, %40, %27 : vector<8x32xi1>, vector<8x32xf32>
    %c2_i32 = arith.constant 2 : i32
    %42 = vector.broadcast %c2_i32 : i32 to vector<8x1xi32>
    %43 = arith.cmpi eq, %21, %42 : vector<8x1xi32>
    %c2 = arith.constant 2 : index
    %c0_15 = arith.constant 0 : index
    %44 = vector.load %arg2[%c2, %c0_15] : memref<4x32xf32, #tpu.memory_space<vmem>>, vector<1x32xf32>
    %45 = vector.shape_cast %43 : vector<8x1xi1> to vector<8x1xi1>
    %46 = vector.broadcast %45 : vector<8x1xi1> to vector<8x32xi1>
    %47 = vector.shape_cast %44 : vector<1x32xf32> to vector<1x32xf32>
    %48 = vector.broadcast %47 : vector<1x32xf32> to vector<8x32xf32>
    %49 = arith.select %46, %48, %35 : vector<8x32xi1>, vector<8x32xf32>
    %c2_16 = arith.constant 2 : index
    %c0_17 = arith.constant 0 : index
    %50 = vector.load %arg3[%c2_16, %c0_17] : memref<4x32xf32, #tpu.memory_space<vmem>>, vector<1x32xf32>
    %51 = vector.shape_cast %43 : vector<8x1xi1> to vector<8x1xi1>
    %52 = vector.broadcast %51 : vector<8x1xi1> to vector<8x32xi1>
    %53 = vector.shape_cast %50 : vector<1x32xf32> to vector<1x32xf32>
    %54 = vector.broadcast %53 : vector<1x32xf32> to vector<8x32xf32>
    %55 = arith.select %52, %54, %41 : vector<8x32xi1>, vector<8x32xf32>
    %c3_i32 = arith.constant 3 : i32
    %56 = vector.broadcast %c3_i32 : i32 to vector<8x1xi32>
    %57 = arith.cmpi eq, %21, %56 : vector<8x1xi32>
    %c3 = arith.constant 3 : index
    %c0_18 = arith.constant 0 : index
    %58 = vector.load %arg2[%c3, %c0_18] : memref<4x32xf32, #tpu.memory_space<vmem>>, vector<1x32xf32>
    %59 = vector.shape_cast %57 : vector<8x1xi1> to vector<8x1xi1>
    %60 = vector.broadcast %59 : vector<8x1xi1> to vector<8x32xi1>
    %61 = vector.shape_cast %58 : vector<1x32xf32> to vector<1x32xf32>
    %62 = vector.broadcast %61 : vector<1x32xf32> to vector<8x32xf32>
    %63 = arith.select %60, %62, %49 : vector<8x32xi1>, vector<8x32xf32>
    %c3_19 = arith.constant 3 : index
    %c0_20 = arith.constant 0 : index
    %64 = vector.load %arg3[%c3_19, %c0_20] : memref<4x32xf32, #tpu.memory_space<vmem>>, vector<1x32xf32>
    %65 = vector.shape_cast %57 : vector<8x1xi1> to vector<8x1xi1>
    %66 = vector.broadcast %65 : vector<8x1xi1> to vector<8x32xi1>
    %67 = vector.shape_cast %64 : vector<1x32xf32> to vector<1x32xf32>
    %68 = vector.broadcast %67 : vector<1x32xf32> to vector<8x32xf32>
    %69 = arith.select %66, %68, %55 : vector<8x32xi1>, vector<8x32xf32>
    %70 = arith.mulf %0, %69 : vector<8x32xf32>
    %71 = arith.addf %63, %70 : vector<8x32xf32>
    %c0_21 = arith.constant 0 : index
    %c0_22 = arith.constant 0 : index
    %72 = vector.load %arg5[%c0_21, %c0_22] : memref<8x32xf32, #tpu.memory_space<vmem>>, vector<8x32xf32>
    tpu.vector_store %arg5[%c0_21, %c0_22], %71 {strides = array<i32>} : memref<8x32xf32, #tpu.memory_space<vmem>>, vector<8x32xf32>,
    %73 = tpu.iota {dimensions = array<i32: 0>} : vector<8x1xi32>
    %c8_i32 = arith.constant 8 : i32
    %74 = arith.muli %arg0, %c8_i32 : i32
    %75 = vector.broadcast %74 : i32 to vector<8x1xi32>
    %76 = arith.addi %73, %75 : vector<8x1xi32>
    %c8_i32_23 = arith.constant 8 : i32
    %77 = vector.broadcast %c8_i32_23 : i32 to vector<8x1xi32>
    %78 = arith.cmpi slt, %76, %77 : vector<8x1xi32>
    %79 = arith.extui %78 : vector<8x1xi1> to vector<8x1xi32>
    %80 = arith.sitofp %79 : vector<8x1xi32> to vector<8x1xf32>
    %81 = vector.broadcast %80 : vector<8x1xf32> to vector<8x32xf32>
    %82 = arith.mulf %71, %81 : vector<8x32xf32>
    %cst_24 = arith.constant 0.000000e+00 : f32
    %83 = vector.broadcast %cst_24 : f32 to vector<8x128xf32>
    %c0_25 = arith.constant 0 : index
    %c0_26 = arith.constant 0 : index
    %84 = vector.load %arg6[%c0_25, %c0_26] : memref<8x128xf32, #tpu.memory_space<vmem>>, vector<8x128xf32>
    tpu.vector_store %arg6[%c0_25, %c0_26], %83 {strides = array<i32>} : memref<8x128xf32, #tpu.memory_space<vmem>>, vector<8x128xf32>,
    %cst_27 = arith.constant dense<0.000000e+00> : vector<32xf32>
    %85 = vector.multi_reduction <add>, %82, %cst_27 [0] : vector<8x32xf32> to vector<32xf32>
    %86 = vector.shape_cast %85 : vector<32xf32> to vector<1x32xf32>
    %c0_28 = arith.constant 0 : index
    %c0_29 = arith.constant 0 : index
    %87 = vector.load %arg6[%c0_28, %c0_29] : memref<8x128xf32, #tpu.memory_space<vmem>>, vector<1x32xf32>
    tpu.vector_store %arg6[%c0_28, %c0_29], %86 {strides = array<i32>} : memref<8x128xf32, #tpu.memory_space<vmem>>, vector<1x32xf32>,
    %88 = arith.mulf %82, %71 : vector<8x32xf32>
    %cst_30 = arith.constant dense<0.000000e+00> : vector<32xf32>
    %89 = vector.multi_reduction <add>, %88, %cst_30 [0] : vector<8x32xf32> to vector<32xf32>
    %90 = vector.shape_cast %89 : vector<32xf32> to vector<1x32xf32>
    %c0_31 = arith.constant 0 : index
    %c32_32 = arith.constant 32 : index
    %91 = vector.load %arg6[%c0_31, %c32_32] : memref<8x128xf32, #tpu.memory_space<vmem>>, vector<1x32xf32>
    tpu.vector_store %arg6[%c0_31, %c32_32], %90 {strides = array<i32>} : memref<8x128xf32, #tpu.memory_space<vmem>>, vector<1x32xf32>,
    return
  }
  func.func @transform_0(%arg0: i32) -> (i32, i32) {
    %c0_i32 = arith.constant 0 : i32
    %c0_i32_0 = arith.constant 0 : i32
    %c0_i32_1 = arith.constant 0 : i32
    return %c0_i32, %c0_i32_0 : i32, i32
  }
  func.func @transform_1(%arg0: i32) -> (i32, i32) {
    %c0_i32 = arith.constant 0 : i32
    %c0_i32_0 = arith.constant 0 : i32
    %c0_i32_1 = arith.constant 0 : i32
    return %c0_i32, %c0_i32_0 : i32, i32
  }
  func.func @transform_2(%arg0: i32) -> (i32, i32) {
    %c0_i32 = arith.constant 0 : i32
    %c0_i32_0 = arith.constant 0 : i32
    %c0_i32_1 = arith.constant 0 : i32
    return %c0_i32, %c0_i32_0 : i32, i32
  }
  func.func @transform_3(%arg0: i32) -> (i32, i32) {
    %c0_i32 = arith.constant 0 : i32
    %c0_i32_0 = arith.constant 0 : i32
    return %arg0, %c0_i32 : i32, i32
  }
  func.func @transform_4(%arg0: i32) -> (i32, i32) {
    %c0_i32 = arith.constant 0 : i32
    %c0_i32_0 = arith.constant 0 : i32
    return %arg0, %c0_i32 : i32, i32
  }
  func.func @transform_5(%arg0: i32) -> (i32, i32) {
    %c0_i32 = arith.constant 0 : i32
    %c0_i32_0 = arith.constant 0 : i32
    return %arg0, %c0_i32 : i32, i32
  }
}

module attributes {stable_mosaic.version = 11 : i64} {
  func.func @_normalize_kernel(%arg0: i32, %arg1: memref<2x128xf32, #tpu.memory_space<vmem>>, %arg2: memref<2x128xf32, #tpu.memory_space<vmem>>, %arg3: memref<2x128xf32, #tpu.memory_space<vmem>>) attributes {dimension_semantics = [#tpu.dimension_semantics<parallel>], iteration_bounds = array<i64: 1>, scalar_prefetch = 0 : i64, scratch_operands = 0 : i64, tpu.core_type = #tpu.core_type<tc>, window_params = [{transform_indices = @transform_0, window_bounds = array<i64: 2, 128>}, {pipeline_mode = #tpu.pipeline_mode<synchronous>, transform_indices = @transform_1, window_bounds = array<i64: 2, 128>}, {transform_indices = @transform_2, window_bounds = array<i64: 2, 128>}]} {
    %c0 = arith.constant 0 : index
    %c0_0 = arith.constant 0 : index
    %0 = vector.load %arg1[%c0, %c0_0] : memref<2x128xf32, #tpu.memory_space<vmem>>, vector<2x128xf32>
    %c0_1 = arith.constant 0 : index
    %c0_2 = arith.constant 0 : index
    %1 = vector.load %arg2[%c0_1, %c0_2] : memref<2x128xf32, #tpu.memory_space<vmem>>, vector<1x128xf32>
    %2 = vector.broadcast %1 : vector<1x128xf32> to vector<2x128xf32>
    %3 = arith.mulf %0, %2 : vector<2x128xf32>
    %c1 = arith.constant 1 : index
    %c0_3 = arith.constant 0 : index
    %4 = vector.load %arg2[%c1, %c0_3] : memref<2x128xf32, #tpu.memory_space<vmem>>, vector<1x128xf32>
    %5 = vector.broadcast %4 : vector<1x128xf32> to vector<2x128xf32>
    %6 = arith.addf %3, %5 : vector<2x128xf32>
    %c0_4 = arith.constant 0 : index
    %c0_5 = arith.constant 0 : index
    %7 = vector.load %arg3[%c0_4, %c0_5] : memref<2x128xf32, #tpu.memory_space<vmem>>, vector<2x128xf32>
    tpu.vector_store %arg3[%c0_4, %c0_5], %6 {strides = array<i32>} : memref<2x128xf32, #tpu.memory_space<vmem>>, vector<2x128xf32>,
    return
  }
  func.func @transform_0(%arg0: i32) -> (i32, i32) {
    %c0_i32 = arith.constant 0 : i32
    %c0_i32_0 = arith.constant 0 : i32
    return %arg0, %c0_i32 : i32, i32
  }
  func.func @transform_1(%arg0: i32) -> (i32, i32) {
    %c0_i32 = arith.constant 0 : i32
    %c0_i32_0 = arith.constant 0 : i32
    %c0_i32_1 = arith.constant 0 : i32
    return %c0_i32, %c0_i32_0 : i32, i32
  }
  func.func @transform_2(%arg0: i32) -> (i32, i32) {
    %c0_i32 = arith.constant 0 : i32
    %c0_i32_0 = arith.constant 0 : i32
    return %arg0, %c0_i32 : i32, i32
  }
}

</mosaic_0001>

<llo_original>
// kernel: tile.13
$region0: #{tile.13}
  #allocation0 [shape = 's32[1]{0}', space=sflag, size = 0x4, scoped, tag = 'scoped memory for tile.13']
  %s0 = inlined_call_operand.vmem [shape: f32[32], index: 0, kind: input, shape index: {}]
  %s1 = inlined_call_operand.vmem [shape: f32[4,32], index: 1, kind: output, shape index: {}]
  // Predicated region
  $region2: #{tile.13} parent=0 // pred_check
    _
  $region3: #{tile.13} parent=0 // pred_check_branch
    %3 = sbr.rel (0) target = $region5
  $region4: #{tile.13} parent=0 // pred_region
    _
  $region5: #{tile.13} parent=0 // pred_fallthru
    _
  %v4 = vld [vmem:[%s0] ss:$0 sm:$0xff]
  %5 = vst [vmem:[%s1] sm:$0xf] %v4

// kernel: tile.14
$region0: #{tile.14}
  %s0 = inlined_call_operand.vmem [shape: f32[4,32], index: 0, kind: input, shape index: {}]
  %s1 = inlined_call_operand.vmem [shape: f32[1,128], index: 1, kind: output, shape index: {}]
  $region1: #{tile.14} parent=0
    #allocation0 [shape = 'u8[4096]{0}', space=vmem, size = 0x1000, scoped, tag = 'scoped mem for output reshape']
    #allocation1 [shape = 'u8[4096]{0}', space=vmem, size = 0x1000, scoped, tag = 'scoped mem for input reshape']
    %s3 = ssub.s32 16, 1
    %v4 = vld [vmem:[%s0] sm:%s3]
    %5 = vst [vmem:[#allocation1] sm:%s3] %v4
    %v6 = vld [vmem:[#allocation1] sm:$0x1]
    %vm7 = vcmask 261120
    %8 = vst.msk [vmem:[#allocation0] sm:$0x1] %vm7, %v6
    %s9 = scalar_lea.vmem [#allocation1], 3
    %v10 = vld [vmem:[%s9] sm:$0x1]
    %11 = vrot.lane.b32.xlu0 %v10, 96
    %v12 = vpop.permute.xlu0 %11
    %vm13 = vcmask 1048320
    %14 = vst.msk [vmem:[#allocation0] sm:$0x1] %vm13, %v12
    %s15 = scalar_lea.vmem [#allocation1], 2
    %v16 = vld [vmem:[%s15] sm:$0x1]
    %17 = vrot.lane.b32.xlu0 %v16, 64
    %v18 = vpop.permute.xlu0 %17
    %vm19 = vcmask 785920
    %20 = vst.msk [vmem:[#allocation0] sm:$0x1] %vm19, %v18
    %s21 = scalar_lea.vmem [#allocation1], 1
    %v22 = vld [vmem:[%s21] sm:$0x1]
    %23 = vrot.lane.b32.xlu0 %v22, 32
    %v24 = vpop.permute.xlu0 %23
    %vm25 = vcmask 523520
    %26 = vst.msk [vmem:[#allocation0] sm:$0x1] %vm25, %v24
    %s28 = ssub.s32 2, 1
    %v29 = vld [vmem:[#allocation0] sm:%s28]
    %s31 = ssub.s32 2, 1
    %32 = vst [vmem:[%s1] sm:%s31] %v29

// kernel: gaussian_mixture_sample.2
$region0: #{gaussian_mixture_sample.2}
  #allocation0 [shape = 'u32[]', space=smem, size = 0x4, offset = 0x4, fixed_abs, tag = 'smem constant byte address 0x4 - core index']
  #allocation1 [shape = 'u32[72,128]{1,0:T(1,128)}', space=vmem, size = 0x9000, scoped, tag = 'internal scratch']
  %s0 = inlined_call_operand.vmem [shape: f32[1,4], index: 0, kind: input, shape index: {}]
  %s1 = inlined_call_operand.vmem [shape: f32[4,32], index: 1, kind: input, shape index: {}]
  %s2 = inlined_call_operand.vmem [shape: f32[4,32], index: 2, kind: input, shape index: {}]
  %s3 = inlined_call_operand.vmem [shape: f32[8,36], index: 3, kind: input, shape index: {}]
  %s4 = inlined_call_operand.vmem [shape: f32[8,32], index: 4, kind: output, shape index: {0}]
  %s5 = inlined_call_operand.vmem [shape: f32[8,128], index: 5, kind: output, shape index: {1}]
  %6 = xla_tuple %s4, %s5
  %s7 = sld [smem:[#allocation0]]
  $region34: #{gaussian_mixture_sample.2} parent=0
    _
  %s9 = ssub.s32 1, %s7
  %s10 = scalar_select 0, %s9, %s7
  // Predicated region
  $region2: #{gaussian_mixture_sample.2} parent=0 // pred_check
    _
  $region3: #{gaussian_mixture_sample.2} parent=0 // pred_check_branch
    %12 = sbr.rel (0) target = $region5
  $region4: #{gaussian_mixture_sample.2} parent=0 // pred_region
    _
  $region5: #{gaussian_mixture_sample.2} parent=0 // pred_fallthru
    _
  // Predicated region
  $region6: #{gaussian_mixture_sample.2} parent=0 // pred_check
    _
  $region7: #{gaussian_mixture_sample.2} parent=0 // pred_check_branch
    %14 = sbr.rel (0) target = $region9
  $region8: #{gaussian_mixture_sample.2} parent=0 // pred_region
    _
  $region9: #{gaussian_mixture_sample.2} parent=0 // pred_fallthru
    _
  // Predicated region
  $region10: #{gaussian_mixture_sample.2} parent=0 // pred_check
    _
  $region11: #{gaussian_mixture_sample.2} parent=0 // pred_check_branch
    %16 = sbr.rel (0) target = $region13
  $region12: #{gaussian_mixture_sample.2} parent=0 // pred_region
    _
  $region13: #{gaussian_mixture_sample.2} parent=0 // pred_fallthru
    _
  // Predicated region
  $region14: #{gaussian_mixture_sample.2} parent=0 // pred_check
    _
  $region15: #{gaussian_mixture_sample.2} parent=0 // pred_check_branch
    %18 = sbr.rel (0) target = $region17
  $region16: #{gaussian_mixture_sample.2} parent=0 // pred_region
    _
  $region17: #{gaussian_mixture_sample.2} parent=0 // pred_fallthru
    _
  %v19 = vld [vmem:[%s3] sm:$0xff]
  %v20 = vmax.f32 %v19, 1.1754944e-38
  %v21 = vmin.f32 %v20, 0.99999994
  %v22 = vld [vmem:[%s0] sm:$0x1]
  %v23 = vlog2.pop %v21
  %v24 = vmul.f32 %v23, 0.6931472
  %v25 = vsub.f32 0.0, %v24
  %v26 = vlog2.pop %v25
  %v27 = vmul.f32 %v26, 0.6931472
  %v29 = vperm.slane %v22, 0
  %32 = vrot.lane.b32.xlu0 %v27, 96
  %v33 = vpop.permute.xlu0 %32
  %v35 = vsub.f32 %v29, %v33
  %vm36 = vcmask 31744
  %v37 = vsel %vm36, %v35, -inf
  %38 = vmax.xlane.f32.xlu0 %v37
  %v39 = vpop.xlane.xlu0 %38
  %v40 = vlaneseq
  %v41 = vand.u32 %v40, 127
  %vm42 = vcmp.ge.f32.partialorder %v35, %v39
  %v43 = vsel %vm42, %v41, 4
  %v44 = vsel %vm36, %v43, 2147483647
  %v45 = vand.u32 %v44, 65535
  %v46 = vshra.s32 %v44, 16
  %v47 = vcvt.s32.f32 %v45
  %v48 = vcvt.s32.f32 %v46
  %49 = vmin.xlane.f32.xlu0 %v48
  %v50 = vpop.xlane.xlu0 %49
  %vm51 = vcmp.eq.f32.partialorder %v48, %v50
  %v52 = vsel %vm51, %v47, inf
  %53 = vmin.xlane.f32.xlu0 %v52
  %v54 = vpop.xlane.xlu0 %53
  %v55 = vcvt.f32.s32 %v54
  %v56 = vcvt.f32.s32 %v50
  %v57 = vshll.u32 %v56, 16
  %v58 = vadd.s32 %v57, %v55
  %v59 = vld [vmem:[%s1] sm:$0x1]
  %v60 = vperm.slane %v59, 0
  %v61 = vld [vmem:[%s2] sm:$0x1]
  %v62 = vperm.slane %v61, 0
  %vm63 = vcmp.eq.s32.totalorder %v58, 1
  %v64 = vld [vmem:[%s1 + $0x1] sm:$0x1]
  %v65 = vsel %vm63, 1, 0
  %vm66 = vcmp.eq.s32.totalorder %v65, 1
  %v67 = vperm.slane %v64, 0
  %v68 = vsel %vm66, %v67, %v60
  %v69 = vld [vmem:[%s2 + $0x1] sm:$0x1]
  %v70 = vperm.slane %v69, 0
  %v71 = vsel %vm66, %v70, %v62
  %vm72 = vcmp.eq.s32.totalorder %v58, 2
  %v73 = vld [vmem:[%s1 + $0x2] sm:$0x1]
  %v74 = vsel %vm72, 1, 0
  %vm75 = vcmp.eq.s32.totalorder %v74, 1
  %v76 = vperm.slane %v73, 0
  %v77 = vsel %vm75, %v76, %v68
  %v78 = vld [vmem:[%s2 + $0x2] sm:$0x1]
  %v79 = vperm.slane %v78, 0
  %v80 = vsel %vm75, %v79, %v71
  %vm81 = vcmp.eq.s32.totalorder %v58, 3
  %v82 = vld [vmem:[%s1 + $0x3] sm:$0x1]
  %v83 = vsel %vm81, 1, 0
  %vm84 = vcmp.eq.s32.totalorder %v83, 1
  %v85 = vperm.slane %v82, 0
  %v86 = vsel %vm84, %v85, %v77
  %v87 = vld [vmem:[%s2 + $0x3] sm:$0x1]
  %v88 = vperm.slane %v87, 0
  %v89 = vsel %vm84, %v88, %v80
  %v90 = vmul.f32 %v19, %v89
  %v91 = vadd.f32 %v86, %v90
  %vm92 = vcmask 261120
  %93 = vst.msk [vmem:[%s4] sm:$0xff] %vm92, %v91
  %v94 = vlaneseq
  %v95 = vshrl.u32 %v94, 7
  %s96 = smul.u32 0, 8
  %v97 = vstv %s96
  %v98 = vadd.s32 %v95, %v97
  %vm99 = vcmp.lt.s32.totalorder %v98, 8
  %v100 = vsel %vm99, 1, 0
  %v101 = vcvt.s32.f32 %v100
  %v102 = vmul.f32 %v91, %v101
  %103 = vst [vmem:[%s5] sm:$0xff] 0.0
  %v104 = vsel %vm92, %v102, 0.0
  %v105 = vrot.slane %v104, 4
  %v106 = vadd.f32 %v104, %v105
  %v107 = vrot.slane %v106, 2
  %v108 = vadd.f32 %v106, %v107
  %v109 = vrot.slane %v108, 1
  %v110 = vadd.f32 %v108, %v109
  %vm111 = vcmask 253952
  %112 = vst.msk [vmem:[%s5] sm:$0x1] %vm111, %v110
  %v113 = vmul.f32 %v102, %v91
  %v114 = vsel %vm92, %v113, 0.0
  %v115 = vrot.slane %v114, 4
  %v116 = vadd.f32 %v114, %v115
  %v117 = vrot.slane %v116, 2
  %v118 = vadd.f32 %v116, %v117
  %v119 = vrot.slane %v118, 1
  %v120 = vadd.f32 %v118, %v119
  %122 = vrot.lane.b32.xlu0 %v120, 32
  %v123 = vpop.permute.xlu0 %122
  %vm125 = vcmask 516352
  %126 = vst.msk [vmem:[%s5] sm:$0x1] %vm125, %v123
  // Predicated region
  $region18: #{gaussian_mixture_sample.2} parent=0 // pred_check
    _
  $region19: #{gaussian_mixture_sample.2} parent=0 // pred_check_branch
    %128 = sbr.rel (0) target = $region21
  $region20: #{gaussian_mixture_sample.2} parent=0 // pred_region
    _
  $region21: #{gaussian_mixture_sample.2} parent=0 // pred_fallthru
    _
  // Predicated region
  $region22: #{gaussian_mixture_sample.2} parent=0 // pred_check
    _
  $region23: #{gaussian_mixture_sample.2} parent=0 // pred_check_branch
    %130 = sbr.rel (0) target = $region25
  $region24: #{gaussian_mixture_sample.2} parent=0 // pred_region
    _
  $region25: #{gaussian_mixture_sample.2} parent=0 // pred_fallthru
    _
  // Predicated region
  $region26: #{gaussian_mixture_sample.2} parent=0 // pred_check
    _
  $region27: #{gaussian_mixture_sample.2} parent=0 // pred_check_branch
    %132 = sbr.rel (0) target = $region29
  $region28: #{gaussian_mixture_sample.2} parent=0 // pred_region
    _
  $region29: #{gaussian_mixture_sample.2} parent=0 // pred_fallthru
    _
  // Predicated region
  $region30: #{gaussian_mixture_sample.2} parent=0 // pred_check
    _
  $region31: #{gaussian_mixture_sample.2} parent=0 // pred_check_branch
    %134 = sbr.rel (0) target = $region33
  $region32: #{gaussian_mixture_sample.2} parent=0 // pred_region
    _
  $region33: #{gaussian_mixture_sample.2} parent=0 // pred_fallthru
    _

// kernel: gaussian_mixture_sample.3
$region0: #{gaussian_mixture_sample.3}
  #allocation0 [shape = 'u32[]', space=smem, size = 0x4, offset = 0x4, fixed_abs, tag = 'smem constant byte address 0x4 - core index']
  #allocation1 [shape = 'u32[72,128]{1,0:T(1,128)}', space=vmem, size = 0x9000, scoped, tag = 'internal scratch']
  %s0 = inlined_call_operand.vmem [shape: f32[2,128], index: 0, kind: input, shape index: {}, may-alias: {0,2}]
  %s1 = inlined_call_operand.vmem [shape: f32[2,128], index: 1, kind: input, shape index: {}]
  %s2 = inlined_call_operand.vmem [shape: f32[2,128], index: 2, kind: output, shape index: {}, may-alias: {0,2}]
  %s3 = sld [smem:[#allocation0]]
  $region18: #{gaussian_mixture_sample.3} parent=0
    _
  %s5 = ssub.s32 1, %s3
  %s6 = scalar_select 0, %s5, %s3
  // Predicated region
  $region2: #{gaussian_mixture_sample.3} parent=0 // pred_check
    _
  $region3: #{gaussian_mixture_sample.3} parent=0 // pred_check_branch
    %8 = sbr.rel (0) target = $region5
  $region4: #{gaussian_mixture_sample.3} parent=0 // pred_region
    _
  $region5: #{gaussian_mixture_sample.3} parent=0 // pred_fallthru
    _
  // Predicated region
  $region6: #{gaussian_mixture_sample.3} parent=0 // pred_check
    _
  $region7: #{gaussian_mixture_sample.3} parent=0 // pred_check_branch
    %10 = sbr.rel (0) target = $region9
  $region8: #{gaussian_mixture_sample.3} parent=0 // pred_region
    _
  $region9: #{gaussian_mixture_sample.3} parent=0 // pred_fallthru
    _
  %v11 = vld [vmem:[%s0] sm:$0x3]
  %v12 = vld [vmem:[%s1] sm:$0x1]
  %v13 = vperm.slane %v12, 0
  %v14 = vmul.f32 %v11, %v13
  %v15 = vld [vmem:[%s1 + $0x1] sm:$0x1]
  %v16 = vperm.slane %v15, 0
  %v17 = vadd.f32 %v14, %v16
  %18 = vst [vmem:[%s2] sm:$0x3] %v17
  // Predicated region
  $region10: #{gaussian_mixture_sample.3} parent=0 // pred_check
    _
  $region11: #{gaussian_mixture_sample.3} parent=0 // pred_check_branch
    %20 = sbr.rel (0) target = $region13
  $region12: #{gaussian_mixture_sample.3} parent=0 // pred_region
    _
  $region13: #{gaussian_mixture_sample.3} parent=0 // pred_fallthru
    _
  // Predicated region
  $region14: #{gaussian_mixture_sample.3} parent=0 // pred_check
    _
  $region15: #{gaussian_mixture_sample.3} parent=0 // pred_check_branch
    %22 = sbr.rel (0) target = $region17
  $region16: #{gaussian_mixture_sample.3} parent=0 // pred_region
    _
  $region17: #{gaussian_mixture_sample.3} parent=0 // pred_fallthru
    _

</llo_original>
